<compile_context>
chip_gen: v7x
topology: tpu7x:2x2x1
jax: 0.10.0
libtpu: 0.0.40
codegen_flags: <defaults>
</compile_context>

<pallas_src>
import functools
from math import sqrt

import jax
import jax.numpy as jnp
from jax.experimental import pallas as pl
from jax.experimental.pallas import tpu as pltpu  # noqa: F401  (kept for parity)


def glimpse_kernel(q_ref, tflat_ref, tT_ref, maskbias_ref,
                   wq_ref, bq_ref, wkT_ref, bkT_ref, wv_ref, bv_ref,
                   wout_ref, bout_ref,
                   expand_ref, segT_tile_ref, cross_ref, fold_ref, gather_ref,
                   alpha_ref, out_ref, *, n_head):
    f32 = jnp.float32

    # Projections -- all standard (1,0) contractions.
    # c_div is pre-folded into wq/bq in the wrapper.
    qp = jnp.dot(q_ref[...], wq_ref[...], preferred_element_type=f32) + bq_ref[...]      # [B, H]
    kpT = jnp.dot(wkT_ref[...], tT_ref[...], preferred_element_type=f32) + bkT_ref[...]  # [H, B*S]
    vp = jnp.dot(tflat_ref[...], wv_ref[...], preferred_element_type=f32) + bv_ref[...]  # [B*S, H]

    # Per-(batch, head) masked queries: row b*n_head+h holds head h's columns of
    # batch b's scaled query, zero elsewhere.  (one tiny MXU push + one VPU mul)
    q2 = jnp.dot(expand_ref[...], qp, preferred_element_type=f32) * segT_tile_ref[...]   # [B*nh, H]

    # Dense scores for all (batch*head, batch*seq) pairs.  Additive bias kills
    # cross-batch pairs and masked positions (exp underflows to exactly 0).
    scores = (jnp.dot(q2, kpT, preferred_element_type=f32)
              + cross_ref[...] + maskbias_ref[...])                                      # [B*nh, B*S]

    # One softmax over the lane axis for every (batch, head) row.
    m = jnp.max(scores, axis=-1, keepdims=True)
    e = jnp.exp(scores - m)
    inv = pl.reciprocal(jnp.sum(e, axis=-1, keepdims=True), approx=True)
    alpha_full = e * inv                                                                 # [B*nh, B*S]

    # Alpha output: fold the (exactly zero) cross-batch columns away and store
    # once as [B*n_head, S]; wrapper reshapes the leading dims for free.
    alpha_ref[...] = jnp.dot(alpha_full, fold_ref[...], preferred_element_type=f32)

    # Weighted value sum for every (batch, head) row, keep each head's own
    # columns, and sum heads within each batch -> pooled [B, H].
    h_full = jnp.dot(alpha_full, vp, preferred_element_type=f32)                         # [B*nh, H]
    pooled = jnp.dot(gather_ref[...], segT_tile_ref[...] * h_full,
                     preferred_element_type=f32)                                         # [B, H]

    if n_head == 1:
        out_ref[...] = pooled
    else:
        out_ref[...] = (jnp.dot(pooled, wout_ref[...], preferred_element_type=f32)
                        + bout_ref[...])


def prepare_glimpse(params, *, n_head, batch_size, seq_len):
    """One-time layout plumbing: transposed/scaled weights + static one-hots.

    Call once per model (and per (B, S) shape); the result is passed to
    glimpse_forward so none of this runs in the per-call hot path.
    """
    f32 = jnp.float32
    H = params["wq"].shape[0]            # nn.Linear weight is [out, in]
    d = H // n_head
    c_div = 1.0 / sqrt(d)
    B, S = batch_size, seq_len

    heads = jnp.arange(H) // d                                            # column -> head id
    segT = (heads[None, :] == jnp.arange(n_head)[:, None]).astype(f32)   # [nh, H]

    return {
        # Weights (c_div folded into the query projection).
        "wq": params["wq"].T.astype(f32) * c_div,          # [I, H]
        "bq": (params["bq"] * c_div)[None, :].astype(f32),  # [1, H]
        "wkT": params["wk"].astype(f32),                    # [H, I] -> kpT = wkT @ target^T
        "bkT": params["bk"][:, None].astype(f32),           # [H, 1]
        "wv": params["wv"].T.astype(f32),                   # [I, H]
        "bv": params["bv"][None, :].astype(f32),            # [1, H]
        "wout": params["wout"].T.astype(f32),               # [H, I]
        "bout": params["bout"][None, :].astype(f32),        # [1, I]
        # Static one-hot helpers.
        "expand": (jnp.arange(B * n_head)[:, None] // n_head ==
                   jnp.arange(B)[None, :]).astype(f32),                        # [B*nh, B]
        "segT_tile": jnp.tile(segT, (B, 1)),                                   # [B*nh, H]
        "cross": jnp.where((jnp.arange(B * n_head)[:, None] // n_head) ==
                           (jnp.arange(B * S)[None, :] // S),
                           0.0, -100000.0).astype(f32),                        # [B*nh, B*S]
        "fold": jnp.tile(jnp.eye(S, dtype=f32), (B, 1)),                       # [B*S, S]
        "gather": (jnp.arange(B)[:, None] ==
                   jnp.arange(B * n_head)[None, :] // n_head).astype(f32),     # [B, B*nh]
    }


def glimpse_forward(query, target, mask, prep, *, n_head):
    """query: [B, I], target: [B, S, I], mask: [B, S] int32 (1 == masked)."""
    B, S, I = target.shape
    H = prep["wq"].shape[1]
    out_dim = H if n_head == 1 else I
    f32 = jnp.float32

    tflat = target.reshape(B * S, I).astype(f32)          # [B*S, I]
    tT = tflat.T                                          # [I, B*S] (layout plumbing)
    mask_bias = (mask.astype(f32) * -100000.0).reshape(1, B * S)

    kernel = functools.partial(glimpse_kernel, n_head=n_head)
    out_shapes = (jax.ShapeDtypeStruct((B * n_head, S), f32),
                  jax.ShapeDtypeStruct((B, out_dim), f32))

    alpha_c, ret = pl.pallas_call(kernel, out_shape=out_shapes)(
        query.astype(f32), tflat, tT, mask_bias,
        prep["wq"], prep["bq"], prep["wkT"], prep["bkT"], prep["wv"], prep["bv"],
        prep["wout"], prep["bout"],
        prep["expand"], prep["segT_tile"], prep["cross"], prep["fold"], prep["gather"],
    )

    alpha = alpha_c.reshape(B, n_head, S)   # free leading-dim reshape
    if n_head == 1:
        alpha = alpha[:, 0, :]              # torch: alpha.squeeze(1)
    return alpha, ret


def glimpse_reference(query, target, mask, params, *, n_head):
    """Pure-JAX reference mirroring the PyTorch forward."""
    B, S, I = target.shape
    H = params["wq"].shape[0]
    d = H // n_head
    c_div = 1.0 / sqrt(d)

    q_c = (query @ params["wq"].T + params["bq"]).reshape(B, n_head, d)
    k = (target @ params["wk"].T + params["bk"]).reshape(B, S, n_head, d).transpose(0, 2, 1, 3)
    v = (target @ params["wv"].T + params["bv"]).reshape(B, S, n_head, d).transpose(0, 2, 1, 3)
    qk = jnp.einsum('ijl,ijkl->ijk', q_c, k) * c_div
    _mask = jnp.repeat(mask[:, None, :].astype(bool), n_head, axis=1)
    qk = jnp.where(_mask, -100000.0, qk)
    alpha = jax.nn.softmax(qk, axis=-1)
    h = jnp.einsum('ijk,ijkl->ijl', alpha, v)
    if n_head == 1:
        return alpha[:, 0, :], h.reshape(B, -1)
    ret = h.reshape(B, -1) @ params["wout"].T + params["bout"]
    return alpha, ret


def init_params(key, input_size, hidden_size):
    """Deterministic synthetic parameters; shapes match nn.Linear (W: [out, in])."""
    ks = jax.random.split(key, 8)
    s_in = 1.0 / sqrt(input_size)
    s_hid = 1.0 / sqrt(hidden_size)
    return {
        "wq": jax.random.normal(ks[0], (hidden_size, input_size), jnp.float32) * s_in,
        "bq": jax.random.normal(ks[1], (hidden_size,), jnp.float32) * s_in,
        "wk": jax.random.normal(ks[2], (hidden_size, input_size), jnp.float32) * s_in,
        "bk": jax.random.normal(ks[3], (hidden_size,), jnp.float32) * s_in,
        "wv": jax.random.normal(ks[4], (hidden_size, input_size), jnp.float32) * s_in,
        "bv": jax.random.normal(ks[5], (hidden_size,), jnp.float32) * s_in,
        "wout": jax.random.normal(ks[6], (input_size, hidden_size), jnp.float32) * s_hid,
        "bout": jax.random.normal(ks[7], (input_size,), jnp.float32) * s_hid,
    }


if __name__ == "__main__":
    B, S = 2, 8
    input_size, hidden_size, n_head = 16, 32, 4

    key = jax.random.PRNGKey(0)
    k_q, k_t, k_p = jax.random.split(key, 3)

    query = jax.random.normal(k_q, (B, input_size), jnp.float32)
    target = jax.random.normal(k_t, (B, S, input_size), jnp.float32)
    # mask: mark the last two sequence positions of batch 0 as masked
    mask = jnp.zeros((B, S), jnp.int32).at[0, -2:].set(1)

    params = init_params(k_p, input_size, hidden_size)

    # One-time weight/one-hot preparation (outside the per-call hot path).
    prep = prepare_glimpse(params, n_head=n_head, batch_size=B, seq_len=S)

    fwd = jax.jit(functools.partial(glimpse_forward, n_head=n_head))
    alpha, ret = fwd(query, target, mask, prep)
    jax.block_until_ready((alpha, ret))

    alpha_ref, ret_ref = glimpse_reference(query, target, mask, params, n_head=n_head)
    assert alpha.shape == (B, n_head, S) and ret.shape == (B, input_size)
    assert jnp.allclose(alpha, alpha_ref, atol=1e-2, rtol=1e-2)
    assert jnp.allclose(ret, ret_ref, atol=1e-2, rtol=1e-2)

    print("KERNEL_OK")
</pallas_src>

<mosaic_0001>
module attributes {stable_mosaic.version = 11 : i64} {
  func.func @glimpse_kernel(%arg0: memref<2x16xf32, #tpu.memory_space<vmem>>, %arg1: memref<16x16xf32, #tpu.memory_space<vmem>>, %arg2: memref<16x16xf32, #tpu.memory_space<vmem>>, %arg3: memref<1x16xf32, #tpu.memory_space<vmem>>, %arg4: memref<16x32xf32, #tpu.memory_space<vmem>>, %arg5: memref<1x32xf32, #tpu.memory_space<vmem>>, %arg6: memref<32x16xf32, #tpu.memory_space<vmem>>, %arg7: memref<32x1xf32, #tpu.memory_space<vmem>>, %arg8: memref<16x32xf32, #tpu.memory_space<vmem>>, %arg9: memref<1x32xf32, #tpu.memory_space<vmem>>, %arg10: memref<32x16xf32, #tpu.memory_space<vmem>>, %arg11: memref<1x16xf32, #tpu.memory_space<vmem>>, %arg12: memref<8x2xf32, #tpu.memory_space<vmem>>, %arg13: memref<8x32xf32, #tpu.memory_space<vmem>>, %arg14: memref<8x16xf32, #tpu.memory_space<vmem>>, %arg15: memref<16x8xf32, #tpu.memory_space<vmem>>, %arg16: memref<2x8xf32, #tpu.memory_space<vmem>>, %arg17: memref<8x8xf32, #tpu.memory_space<vmem>>, %arg18: memref<2x16xf32, #tpu.memory_space<vmem>>) attributes {dimension_semantics = [], scalar_prefetch = 0 : i64, scratch_operands = 0 : i64, tpu.core_type = #tpu.core_type<tc>} {
    %c0 = arith.constant 0 : index
    %c0_0 = arith.constant 0 : index
    %0 = vector.load %arg0[%c0, %c0_0] : memref<2x16xf32, #tpu.memory_space<vmem>>, vector<2x16xf32>
    %c0_1 = arith.constant 0 : index
    %c0_2 = arith.constant 0 : index
    %1 = vector.load %arg4[%c0_1, %c0_2] : memref<16x32xf32, #tpu.memory_space<vmem>>, vector<16x32xf32>
    %cst = arith.constant dense<0.000000e+00> : vector<2x32xf32>
    %2 = tpu.matmul %0, %1, %cst {dimension_numbers = #tpu.dot_dimension_numbers<[1], [0], [0], [1], [0, 0, 1, 1], [], []>} : vector<2x16xf32>, vector<16x32xf32>, vector<2x32xf32> -> vector<2x32xf32>
    %c0_3 = arith.constant 0 : index
    %c0_4 = arith.constant 0 : index
    %3 = vector.load %arg5[%c0_3, %c0_4] : memref<1x32xf32, #tpu.memory_space<vmem>>, vector<1x32xf32>
    %4 = vector.broadcast %3 : vector<1x32xf32> to vector<2x32xf32>
    %5 = arith.addf %2, %4 : vector<2x32xf32>
    %c0_5 = arith.constant 0 : index
    %c0_6 = arith.constant 0 : index
    %6 = vector.load %arg6[%c0_5, %c0_6] : memref<32x16xf32, #tpu.memory_space<vmem>>, vector<32x16xf32>
    %c0_7 = arith.constant 0 : index
    %c0_8 = arith.constant 0 : index
    %7 = vector.load %arg2[%c0_7, %c0_8] : memref<16x16xf32, #tpu.memory_space<vmem>>, vector<16x16xf32>
    %cst_9 = arith.constant dense<0.000000e+00> : vector<32x16xf32>
    %8 = tpu.matmul %6, %7, %cst_9 {dimension_numbers = #tpu.dot_dimension_numbers<[1], [0], [0], [1], [0, 0, 1, 1], [], []>} : vector<32x16xf32>, vector<16x16xf32>, vector<32x16xf32> -> vector<32x16xf32>
    %c0_10 = arith.constant 0 : index
    %c0_11 = arith.constant 0 : index
    %9 = vector.load %arg7[%c0_10, %c0_11] : memref<32x1xf32, #tpu.memory_space<vmem>>, vector<32x1xf32>
    %10 = vector.broadcast %9 : vector<32x1xf32> to vector<32x16xf32>
    %11 = arith.addf %8, %10 : vector<32x16xf32>
    %c0_12 = arith.constant 0 : index
    %c0_13 = arith.constant 0 : index
    %12 = vector.load %arg1[%c0_12, %c0_13] : memref<16x16xf32, #tpu.memory_space<vmem>>, vector<16x16xf32>
    %c0_14 = arith.constant 0 : index
    %c0_15 = arith.constant 0 : index
    %13 = vector.load %arg8[%c0_14, %c0_15] : memref<16x32xf32, #tpu.memory_space<vmem>>, vector<16x32xf32>
    %cst_16 = arith.constant dense<0.000000e+00> : vector<16x32xf32>
    %14 = tpu.matmul %12, %13, %cst_16 {dimension_numbers = #tpu.dot_dimension_numbers<[1], [0], [0], [1], [0, 0, 1, 1], [], []>} : vector<16x16xf32>, vector<16x32xf32>, vector<16x32xf32> -> vector<16x32xf32>
    %c0_17 = arith.constant 0 : index
    %c0_18 = arith.constant 0 : index
    %15 = vector.load %arg9[%c0_17, %c0_18] : memref<1x32xf32, #tpu.memory_space<vmem>>, vector<1x32xf32>
    %16 = vector.broadcast %15 : vector<1x32xf32> to vector<16x32xf32>
    %17 = arith.addf %14, %16 : vector<16x32xf32>
    %c0_19 = arith.constant 0 : index
    %c0_20 = arith.constant 0 : index
    %18 = vector.load %arg12[%c0_19, %c0_20] : memref<8x2xf32, #tpu.memory_space<vmem>>, vector<8x2xf32>
    %cst_21 = arith.constant dense<0.000000e+00> : vector<8x32xf32>
    %19 = tpu.matmul %18, %5, %cst_21 {dimension_numbers = #tpu.dot_dimension_numbers<[1], [0], [0], [1], [0, 0, 1, 1], [], []>} : vector<8x2xf32>, vector<2x32xf32>, vector<8x32xf32> -> vector<8x32xf32>
    %c0_22 = arith.constant 0 : index
    %c0_23 = arith.constant 0 : index
    %20 = vector.load %arg13[%c0_22, %c0_23] : memref<8x32xf32, #tpu.memory_space<vmem>>, vector<8x32xf32>
    %21 = arith.mulf %19, %20 : vector<8x32xf32>
    %cst_24 = arith.constant dense<0.000000e+00> : vector<8x16xf32>
    %22 = tpu.matmul %21, %11, %cst_24 {dimension_numbers = #tpu.dot_dimension_numbers<[1], [0], [0], [1], [0, 0, 1, 1], [], []>} : vector<8x32xf32>, vector<32x16xf32>, vector<8x16xf32> -> vector<8x16xf32>
    %c0_25 = arith.constant 0 : index
    %c0_26 = arith.constant 0 : index
    %23 = vector.load %arg14[%c0_25, %c0_26] : memref<8x16xf32, #tpu.memory_space<vmem>>, vector<8x16xf32>
    %24 = arith.addf %22, %23 : vector<8x16xf32>
    %c0_27 = arith.constant 0 : index
    %c0_28 = arith.constant 0 : index
    %25 = vector.load %arg3[%c0_27, %c0_28] : memref<1x16xf32, #tpu.memory_space<vmem>>, vector<1x16xf32>
    %26 = vector.broadcast %25 : vector<1x16xf32> to vector<8x16xf32>
    %27 = arith.addf %24, %26 : vector<8x16xf32>
    %cst_29 = arith.constant dense<0xFF800000> : vector<8xf32>
    %28 = vector.multi_reduction <maximumf>, %27, %cst_29 [1] : vector<8x16xf32> to vector<8xf32>
    %29 = vector.shape_cast %28 : vector<8xf32> to vector<8x1xf32>
    %30 = vector.broadcast %29 : vector<8x1xf32> to vector<8x16xf32>
    %31 = arith.subf %27, %30 : vector<8x16xf32>
    %32 = math.exp %31 : vector<8x16xf32>
    %cst_30 = arith.constant dense<0.000000e+00> : vector<8xf32>
    %33 = vector.multi_reduction <add>, %32, %cst_30 [1] : vector<8x16xf32> to vector<8xf32>
    %34 = vector.shape_cast %33 : vector<8xf32> to vector<8x1xf32>
    %35 = tpu.reciprocal %34 {approx = true} : vector<8x1xf32> -> vector<8x1xf32>
    %36 = vector.broadcast %35 : vector<8x1xf32> to vector<8x16xf32>
    %37 = arith.mulf %32, %36 : vector<8x16xf32>
    %c0_31 = arith.constant 0 : index
    %c0_32 = arith.constant 0 : index
    %38 = vector.load %arg15[%c0_31, %c0_32] : memref<16x8xf32, #tpu.memory_space<vmem>>, vector<16x8xf32>
    %cst_33 = arith.constant dense<0.000000e+00> : vector<8x8xf32>
    %39 = tpu.matmul %37, %38, %cst_33 {dimension_numbers = #tpu.dot_dimension_numbers<[1], [0], [0], [1], [0, 0, 1, 1], [], []>} : vector<8x16xf32>, vector<16x8xf32>, vector<8x8xf32> -> vector<8x8xf32>
    %c0_34 = arith.constant 0 : index
    %c0_35 = arith.constant 0 : index
    %40 = vector.load %arg17[%c0_34, %c0_35] : memref<8x8xf32, #tpu.memory_space<vmem>>, vector<8x8xf32>
    tpu.vector_store %arg17[%c0_34, %c0_35], %39 {strides = array<i32>} : memref<8x8xf32, #tpu.memory_space<vmem>>, vector<8x8xf32>,
    %cst_36 = arith.constant dense<0.000000e+00> : vector<8x32xf32>
    %41 = tpu.matmul %37, %17, %cst_36 {dimension_numbers = #tpu.dot_dimension_numbers<[1], [0], [0], [1], [0, 0, 1, 1], [], []>} : vector<8x16xf32>, vector<16x32xf32>, vector<8x32xf32> -> vector<8x32xf32>
    %c0_37 = arith.constant 0 : index
    %c0_38 = arith.constant 0 : index
    %42 = vector.load %arg16[%c0_37, %c0_38] : memref<2x8xf32, #tpu.memory_space<vmem>>, vector<2x8xf32>
    %c0_39 = arith.constant 0 : index
    %c0_40 = arith.constant 0 : index
    %43 = vector.load %arg13[%c0_39, %c0_40] : memref<8x32xf32, #tpu.memory_space<vmem>>, vector<8x32xf32>
    %44 = arith.mulf %43, %41 : vector<8x32xf32>
    %cst_41 = arith.constant dense<0.000000e+00> : vector<2x32xf32>
    %45 = tpu.matmul %42, %44, %cst_41 {dimension_numbers = #tpu.dot_dimension_numbers<[1], [0], [0], [1], [0, 0, 1, 1], [], []>} : vector<2x8xf32>, vector<8x32xf32>, vector<2x32xf32> -> vector<2x32xf32>
    %c0_42 = arith.constant 0 : index
    %c0_43 = arith.constant 0 : index
    %46 = vector.load %arg10[%c0_42, %c0_43] : memref<32x16xf32, #tpu.memory_space<vmem>>, vector<32x16xf32>
    %cst_44 = arith.constant dense<0.000000e+00> : vector<2x16xf32>
    %47 = tpu.matmul %45, %46, %cst_44 {dimension_numbers = #tpu.dot_dimension_numbers<[1], [0], [0], [1], [0, 0, 1, 1], [], []>} : vector<2x32xf32>, vector<32x16xf32>, vector<2x16xf32> -> vector<2x16xf32>
    %c0_45 = arith.constant 0 : index
    %c0_46 = arith.constant 0 : index
    %48 = vector.load %arg11[%c0_45, %c0_46] : memref<1x16xf32, #tpu.memory_space<vmem>>, vector<1x16xf32>
    %49 = vector.broadcast %48 : vector<1x16xf32> to vector<2x16xf32>
    %50 = arith.addf %47, %49 : vector<2x16xf32>
    %c0_47 = arith.constant 0 : index
    %c0_48 = arith.constant 0 : index
    %51 = vector.load %arg18[%c0_47, %c0_48] : memref<2x16xf32, #tpu.memory_space<vmem>>, vector<2x16xf32>
    tpu.vector_store %arg18[%c0_47, %c0_48], %50 {strides = array<i32>} : memref<2x16xf32, #tpu.memory_space<vmem>>, vector<2x16xf32>,
    return
  }
}

</mosaic_0001>

<llo_original>
// kernel: glimpse_forward.1
$region0: #{glimpse_forward.1}
  #allocation0 [shape = 'u32[]', space=smem, size = 0x4, offset = 0x4, fixed_abs, tag = 'smem constant byte address 0x4 - core index']
  #allocation1 [shape = 'u32[144,128]{1,0:T(1,128)}', space=vmem, size = 0x12000, scoped, tag = 'internal scratch']
  %s0 = inlined_call_operand.vmem [shape: f32[2,16], index: 0, kind: input, shape index: {}]
  %s1 = inlined_call_operand.vmem [shape: f32[16,16], index: 1, kind: input, shape index: {}]
  %s2 = inlined_call_operand.vmem [shape: f32[16,16], index: 2, kind: input, shape index: {}]
  %s3 = inlined_call_operand.vmem [shape: f32[1,16], index: 3, kind: input, shape index: {}]
  %s4 = inlined_call_operand.vmem [shape: f32[16,32], index: 4, kind: input, shape index: {}]
  %s5 = inlined_call_operand.vmem [shape: f32[1,32], index: 5, kind: input, shape index: {}]
  %s6 = inlined_call_operand.vmem [shape: f32[32,16], index: 6, kind: input, shape index: {}]
  %s7 = inlined_call_operand.vmem [shape: f32[32,1], index: 7, kind: input, shape index: {}]
  %s8 = inlined_call_operand.vmem [shape: f32[16,32], index: 8, kind: input, shape index: {}]
  %s9 = inlined_call_operand.vmem [shape: f32[1,32], index: 9, kind: input, shape index: {}]
  %s10 = inlined_call_operand.vmem [shape: f32[32,16], index: 10, kind: input, shape index: {}]
  %s11 = inlined_call_operand.vmem [shape: f32[1,16], index: 11, kind: input, shape index: {}]
  %s12 = inlined_call_operand.vmem [shape: f32[8,2], index: 12, kind: input, shape index: {}]
  %s13 = inlined_call_operand.vmem [shape: f32[8,32], index: 13, kind: input, shape index: {}]
  %s14 = inlined_call_operand.vmem [shape: f32[8,16], index: 14, kind: input, shape index: {}]
  %s15 = inlined_call_operand.vmem [shape: f32[16,8], index: 15, kind: input, shape index: {}]
  %s16 = inlined_call_operand.vmem [shape: f32[2,8], index: 16, kind: input, shape index: {}]
  %s17 = inlined_call_operand.hbm [shape: f32[8,8], index: 17, kind: output, shape index: {0}]
  %s18 = inlined_call_operand.hbm [shape: f32[2,16], index: 18, kind: output, shape index: {1}]
  %19 = xla_tuple %s17, %s18
  %s20 = sld [smem:[#allocation0]]
  $region86: #{glimpse_forward.1} parent=0
    _
  %s22 = ssub.s32 1, %s20
  %s23 = scalar_select 0, %s22, %s20
  $region1: #{glimpse_forward.1} parent=0
    #allocation2 [shape = 'u8[4096]{0}', space=vmem, size = 0x1000, scoped, tag = 'output window, operand 0, single buffered']
    #allocation3 [shape = 's32[1]{0}', space=sflag, size = 0x4, scoped, tag = 'scoped memory for glimpse_forward.1']
    #allocation4 [shape = 'u8[1024]{0}', space=vmem, size = 0x400, scoped, tag = 'output window, operand 1, single buffered']
    #allocation5 [shape = 's32[1]{0}', space=sflag, size = 0x4, scoped, tag = 'scoped memory for glimpse_forward.1']
    %24 = vsyncpa [#allocation3], 0
    %25 = vsyncpa [#allocation5], 0
    // Predicated region
    $region2: #{glimpse_forward.1} parent=1 // pred_check
      _
    $region3: #{glimpse_forward.1} parent=1 // pred_check_branch
      %27 = sbr.rel (0) target = $region5
    $region4: #{glimpse_forward.1} parent=1 // pred_region
      _
    $region5: #{glimpse_forward.1} parent=1 // pred_fallthru
      _
    // Predicated region
    $region6: #{glimpse_forward.1} parent=1 // pred_check
      _
    $region7: #{glimpse_forward.1} parent=1 // pred_check_branch
      %29 = sbr.rel (0) target = $region9
    $region8: #{glimpse_forward.1} parent=1 // pred_region
      _
    $region9: #{glimpse_forward.1} parent=1 // pred_fallthru
      _
    // Predicated region
    $region10: #{glimpse_forward.1} parent=1 // pred_check
      _
    $region11: #{glimpse_forward.1} parent=1 // pred_check_branch
      %31 = sbr.rel (0) target = $region13
    $region12: #{glimpse_forward.1} parent=1 // pred_region
      _
    $region13: #{glimpse_forward.1} parent=1 // pred_fallthru
      _
    // Predicated region
    $region14: #{glimpse_forward.1} parent=1 // pred_check
      _
    $region15: #{glimpse_forward.1} parent=1 // pred_check_branch
      %33 = sbr.rel (0) target = $region17
    $region16: #{glimpse_forward.1} parent=1 // pred_region
      _
    $region17: #{glimpse_forward.1} parent=1 // pred_fallthru
      _
    // Predicated region
    $region18: #{glimpse_forward.1} parent=1 // pred_check
      _
    $region19: #{glimpse_forward.1} parent=1 // pred_check_branch
      %35 = sbr.rel (0) target = $region21
    $region20: #{glimpse_forward.1} parent=1 // pred_region
      _
    $region21: #{glimpse_forward.1} parent=1 // pred_fallthru
      _
    // Predicated region
    $region22: #{glimpse_forward.1} parent=1 // pred_check
      _
    $region23: #{glimpse_forward.1} parent=1 // pred_check_branch
      %37 = sbr.rel (0) target = $region25
    $region24: #{glimpse_forward.1} parent=1 // pred_region
      _
    $region25: #{glimpse_forward.1} parent=1 // pred_fallthru
      _
    // Predicated region
    $region26: #{glimpse_forward.1} parent=1 // pred_check
      _
    $region27: #{glimpse_forward.1} parent=1 // pred_check_branch
      %39 = sbr.rel (0) target = $region29
    $region28: #{glimpse_forward.1} parent=1 // pred_region
      _
    $region29: #{glimpse_forward.1} parent=1 // pred_fallthru
      _
    // Predicated region
    $region30: #{glimpse_forward.1} parent=1 // pred_check
      _
    $region31: #{glimpse_forward.1} parent=1 // pred_check_branch
      %41 = sbr.rel (0) target = $region33
    $region32: #{glimpse_forward.1} parent=1 // pred_region
      _
    $region33: #{glimpse_forward.1} parent=1 // pred_fallthru
      _
    // Predicated region
    $region34: #{glimpse_forward.1} parent=1 // pred_check
      _
    $region35: #{glimpse_forward.1} parent=1 // pred_check_branch
      %43 = sbr.rel (0) target = $region37
    $region36: #{glimpse_forward.1} parent=1 // pred_region
      _
    $region37: #{glimpse_forward.1} parent=1 // pred_fallthru
      _
    // Predicated region
    $region38: #{glimpse_forward.1} parent=1 // pred_check
      _
    $region39: #{glimpse_forward.1} parent=1 // pred_check_branch
      %45 = sbr.rel (0) target = $region41
    $region40: #{glimpse_forward.1} parent=1 // pred_region
      _
    $region41: #{glimpse_forward.1} parent=1 // pred_fallthru
      _
    // Predicated region
    $region42: #{glimpse_forward.1} parent=1 // pred_check
      _
    $region43: #{glimpse_forward.1} parent=1 // pred_check_branch
      %47 = sbr.rel (0) target = $region45
    $region44: #{glimpse_forward.1} parent=1 // pred_region
      _
    $region45: #{glimpse_forward.1} parent=1 // pred_fallthru
      _
    // Predicated region
    $region46: #{glimpse_forward.1} parent=1 // pred_check
      _
    $region47: #{glimpse_forward.1} parent=1 // pred_check_branch
      %49 = sbr.rel (0) target = $region49
    $region48: #{glimpse_forward.1} parent=1 // pred_region
      _
    $region49: #{glimpse_forward.1} parent=1 // pred_fallthru
      _
    // Predicated region
    $region50: #{glimpse_forward.1} parent=1 // pred_check
      _
    $region51: #{glimpse_forward.1} parent=1 // pred_check_branch
      %51 = sbr.rel (0) target = $region53
    $region52: #{glimpse_forward.1} parent=1 // pred_region
      _
    $region53: #{glimpse_forward.1} parent=1 // pred_fallthru
      _
    // Predicated region
    $region54: #{glimpse_forward.1} parent=1 // pred_check
      _
    $region55: #{glimpse_forward.1} parent=1 // pred_check_branch
      %53 = sbr.rel (0) target = $region57
    $region56: #{glimpse_forward.1} parent=1 // pred_region
      _
    $region57: #{glimpse_forward.1} parent=1 // pred_fallthru
      _
    // Predicated region
    $region58: #{glimpse_forward.1} parent=1 // pred_check
      _
    $region59: #{glimpse_forward.1} parent=1 // pred_check_branch
      %55 = sbr.rel (0) target = $region61
    $region60: #{glimpse_forward.1} parent=1 // pred_region
      _
    $region61: #{glimpse_forward.1} parent=1 // pred_fallthru
      _
    // Predicated region
    $region62: #{glimpse_forward.1} parent=1 // pred_check
      _
    $region63: #{glimpse_forward.1} parent=1 // pred_check_branch
      %57 = sbr.rel (0) target = $region65
    $region64: #{glimpse_forward.1} parent=1 // pred_region
      _
    $region65: #{glimpse_forward.1} parent=1 // pred_fallthru
      _
    // Predicated region
    $region66: #{glimpse_forward.1} parent=1 // pred_check
      _
    $region67: #{glimpse_forward.1} parent=1 // pred_check_branch
      %59 = sbr.rel (0) target = $region69
    $region68: #{glimpse_forward.1} parent=1 // pred_region
      _
    $region69: #{glimpse_forward.1} parent=1 // pred_fallthru
      _
    %v60 = vld [vmem:[%s0] sm:$0x3]
    %v61 = vld [vmem:[%s4] sm:$0xff]
    %v62 = vld [vmem:[%s4 + $0x8] sm:$0xff]
    %v63 = vld [vmem:[%s5] sm:$0x1]
    %v65 = vlaneseq
    %v66 = vshrl.u32 %v65, 7
    %v67 = vsub.s32 0, %v66
    %v68 = vrot.slane %v63, %v67
    %vm70 = vcmask 130048
    %v72 = vsel %vm70, %v60, 0
    %74 = vmatprep.subr.mxu0 0.0
    %75 = vmatpush1.msra.mxu0 %v61
    %76 = vmatprep.subr.mxu0 0.0
    %77 = vmatpush1.msra.mxu0 %v62
    %78 = vmatprep.subr.mxu0 0.0
    %79 = vmatpush1.msra.mxu0 0.0
    %80 = vmatprep.subr.mxu0 0.0
    %81 = vmatpush1.msra.mxu0 0.0
    %82 = vmatprep.subr.mxu0 0.0
    %83 = vmatpush1.msra.mxu0 0.0
    %84 = vmatprep.subr.mxu0 0.0
    %85 = vmatpush1.msra.mxu0 0.0
    %86 = vmatprep.subr.mxu0 0.0
    %87 = vmatpush1.msra.mxu0 0.0
    %88 = vmatprep.subr.mxu0 0.0
    %89 = vmatpush1.msra.mxu0 0.0
    %90 = vmatprep.subr.mxu0 0.0
    %91 = vmatpush1.msra.mxu0 0.0
    %92 = vmatprep.subr.mxu0 0.0
    %93 = vmatpush1.msra.mxu0 0.0
    %94 = vmatprep.subr.mxu0 0.0
    %95 = vmatpush1.msra.mxu0 0.0
    %96 = vmatprep.subr.mxu0 0.0
    %97 = vmatpush1.msra.mxu0 0.0
    %98 = vmatprep.subr.mxu0 0.0
    %99 = vmatpush1.msra.mxu0 0.0
    %100 = vmatprep.subr.mxu0 0.0
    %101 = vmatpush1.msra.mxu0 0.0
    %102 = vmatprep.subr.mxu0 0.0
    %103 = vmatpush1.msra.mxu0 0.0
    %104 = vmatprep.subr.mxu0 0.0
    %105 = vmatpush1.msra.mxu0 0.0
    %106 = vmatprep.subr.mxu0 0.0
    %107 = vmatpush1.msra.mxu0 0.0
    %108 = vmatprep.subr.mxu0 0.0
    %109 = vmatpush1.msra.mxu0 0.0
    %110 = vmatprep.subr.mxu0 0.0
    %111 = vmatpush1.msra.mxu0 0.0
    %112 = vmatprep.subr.mxu0 0.0
    %113 = vmatpush1.msra.mxu0 0.0
    %114 = vmatprep.subr.mxu0 0.0
    %115 = vmatpush1.msra.mxu0 0.0
    %116 = vmatprep.subr.mxu0 0.0
    %117 = vmatpush1.msra.mxu0 0.0
    %118 = vmatprep.subr.mxu0 0.0
    %119 = vmatpush1.msra.mxu0 0.0
    %120 = vmatprep.subr.mxu0 0.0
    %121 = vmatpush1.msra.mxu0 0.0
    %122 = vmatprep.subr.mxu0 0.0
    %123 = vmatpush1.msra.mxu0 0.0
    %124 = vmatprep.subr.mxu0 0.0
    %125 = vmatpush1.msra.mxu0 0.0
    %126 = vmatprep.subr.mxu0 0.0
    %127 = vmatpush1.msra.mxu0 0.0
    %128 = vmatprep.subr.mxu0 0.0
    %129 = vmatpush1.msra.mxu0 0.0
    %130 = vmatprep.subr.mxu0 0.0
    %131 = vmatpush1.msra.mxu0 0.0
    %132 = vmatprep.subr.mxu0 0.0
    %133 = vmatpush1.msra.mxu0 0.0
    %134 = vmatprep.subr.mxu0 0.0
    %135 = vmatpush1.msra.mxu0 0.0
    %136 = vmatprep.subr.mxu0 0.0
    %137 = vmatpush1.msra.mxu0 0.0
    %138 = vmatprep.mubr.f32.mxu0 0.0
    %139 = vmatmul.mubr.f32.gmra.mrb[0].mxu0 %v72
    %v140 = vpop.f32.mrb[0].mxu0
    %v141 = vadd.f32 %v68, %v140
    %v142 = vpop.f32.mrb[0].mxu0
    %143 = vdwg.mxu0
    %v144 = vld [vmem:[%s6] sm:$0xff]
    %v145 = vld [vmem:[%s6 + $0x8] sm:$0xff]
    %v146 = vld [vmem:[%s6 + $0x10] sm:$0xff]
    %v147 = vld [vmem:[%s6 + $0x18] sm:$0xff]
    %v148 = vld [vmem:[%s2] sm:$0xff]
    %v149 = vld [vmem:[%s2 + $0x8] sm:$0xff]
    %v150 = vld [vmem:[%s7] sm:$0xff]
    %v151 = vld [vmem:[%s7 + $0x8] sm:$0xff]
    %v152 = vld [vmem:[%s7 + $0x10] sm:$0xff]
    %v153 = vld [vmem:[%s7 + $0x18] sm:$0xff]
    %155 = vset.pattern.permute.xlu0 0
    %156 = vperm.xlu0 %155, %v150
    %v157 = vpop.permute.xlu0 %156
    %160 = vset.pattern.permute.xlu0 0
    %161 = vperm.xlu0 %160, %v151
    %v162 = vpop.permute.xlu0 %161
    %165 = vset.pattern.permute.xlu0 0
    %166 = vperm.xlu0 %165, %v152
    %v167 = vpop.permute.xlu0 %166
    %170 = vset.pattern.permute.xlu0 0
    %171 = vperm.xlu0 %170, %v153
    %v172 = vpop.permute.xlu0 %171
    %v175 = vsel %vm70, %v144, 0
    %v178 = vsel %vm70, %v145, 0
    %v181 = vsel %vm70, %v146, 0
    %v184 = vsel %vm70, %v147, 0
    %186 = vmatprep.subr.mxu0 0.0
    %187 = vmatpush1.msra.mxu0 %v148
    %188 = vmatprep.subr.mxu0 0.0
    %189 = vmatpush1.msra.mxu0 %v149
    %190 = vmatprep.subr.mxu0 0.0
    %191 = vmatpush1.msra.mxu0 0.0
    %192 = vmatprep.subr.mxu0 0.0
    %193 = vmatpush1.msra.mxu0 0.0
    %194 = vmatprep.subr.mxu0 0.0
    %195 = vmatpush1.msra.mxu0 0.0
    %196 = vmatprep.subr.mxu0 0.0
    %197 = vmatpush1.msra.mxu0 0.0
    %198 = vmatprep.subr.mxu0 0.0
    %199 = vmatpush1.msra.mxu0 0.0
    %200 = vmatprep.subr.mxu0 0.0
    %201 = vmatpush1.msra.mxu0 0.0
    %202 = vmatprep.subr.mxu0 0.0
    %203 = vmatpush1.msra.mxu0 0.0
    %204 = vmatprep.subr.mxu0 0.0
    %205 = vmatpush1.msra.mxu0 0.0
    %206 = vmatprep.subr.mxu0 0.0
    %207 = vmatpush1.msra.mxu0 0.0
    %208 = vmatprep.subr.mxu0 0.0
    %209 = vmatpush1.msra.mxu0 0.0
    %210 = vmatprep.subr.mxu0 0.0
    %211 = vmatpush1.msra.mxu0 0.0
    %212 = vmatprep.subr.mxu0 0.0
    %213 = vmatpush1.msra.mxu0 0.0
    %214 = vmatprep.subr.mxu0 0.0
    %215 = vmatpush1.msra.mxu0 0.0
    %216 = vmatprep.subr.mxu0 0.0
    %217 = vmatpush1.msra.mxu0 0.0
    %218 = vmatprep.subr.mxu0 0.0
    %219 = vmatpush1.msra.mxu0 0.0
    %220 = vmatprep.subr.mxu0 0.0
    %221 = vmatpush1.msra.mxu0 0.0
    %222 = vmatprep.subr.mxu0 0.0
    %223 = vmatpush1.msra.mxu0 0.0
    %224 = vmatprep.subr.mxu0 0.0
    %225 = vmatpush1.msra.mxu0 0.0
    %226 = vmatprep.subr.mxu0 0.0
    %227 = vmatpush1.msra.mxu0 0.0
    %228 = vmatprep.subr.mxu0 0.0
    %229 = vmatpush1.msra.mxu0 0.0
    %230 = vmatprep.subr.mxu0 0.0
    %231 = vmatpush1.msra.mxu0 0.0
    %232 = vmatprep.subr.mxu0 0.0
    %233 = vmatpush1.msra.mxu0 0.0
    %234 = vmatprep.subr.mxu0 0.0
    %235 = vmatpush1.msra.mxu0 0.0
    %236 = vmatprep.subr.mxu0 0.0
    %237 = vmatpush1.msra.mxu0 0.0
    %238 = vmatprep.subr.mxu0 0.0
    %239 = vmatpush1.msra.mxu0 0.0
    %240 = vmatprep.subr.mxu0 0.0
    %241 = vmatpush1.msra.mxu0 0.0
    %242 = vmatprep.subr.mxu0 0.0
    %243 = vmatpush1.msra.mxu0 0.0
    %244 = vmatprep.subr.mxu0 0.0
    %245 = vmatpush1.msra.mxu0 0.0
    %246 = vmatprep.subr.mxu0 0.0
    %247 = vmatpush1.msra.mxu0 0.0
    %248 = vmatprep.subr.mxu0 0.0
    %249 = vmatpush1.msra.mxu0 0.0
    %250 = vmatprep.mubr.f32.mxu0 0.0
    %251 = vmatmul.mubr.f32.gmra.mrb[0].mxu0 %v175
    %v252 = vpop.f32.mrb[0].mxu0
    %v253 = vadd.f32 %v157, %v252
    %v254 = vpop.f32.mrb[0].mxu0
    %255 = vmatprep.mubr.f32.mxu0 0.0
    %256 = vmatmul.mubr.f32.gmra.mrb[0].mxu0 %v178
    %v257 = vpop.f32.mrb[0].mxu0
    %v258 = vadd.f32 %v162, %v257
    %v259 = vpop.f32.mrb[0].mxu0
    %260 = vmatprep.mubr.f32.mxu0 0.0
    %261 = vmatmul.mubr.f32.gmra.mrb[0].mxu0 %v181
    %v262 = vpop.f32.mrb[0].mxu0
    %v263 = vadd.f32 %v167, %v262
    %v264 = vpop.f32.mrb[0].mxu0
    %265 = vmatprep.mubr.f32.mxu0 0.0
    %266 = vmatmul.mubr.f32.gmra.mrb[0].mxu0 %v184
    %v267 = vpop.f32.mrb[0].mxu0
    %v268 = vadd.f32 %v172, %v267
    %v269 = vpop.f32.mrb[0].mxu0
    %270 = vdwg.mxu0
    %v271 = vld [vmem:[%s1] sm:$0xff]
    %v272 = vld [vmem:[%s1 + $0x8] sm:$0xff]
    %v273 = vld [vmem:[%s8] sm:$0xff]
    %v274 = vld [vmem:[%s8 + $0x8] sm:$0xff]
    %v275 = vld [vmem:[%s9] sm:$0x1]
    %v277 = vlaneseq
    %v278 = vshrl.u32 %v277, 7
    %v279 = vsub.s32 0, %v278
    %v280 = vrot.slane %v275, %v279
    %v283 = vsel %vm70, %v271, 0
    %v286 = vsel %vm70, %v272, 0
    %288 = vmatprep.subr.mxu0 0.0
    %289 = vmatpush1.msra.mxu0 %v273
    %290 = vmatprep.subr.mxu0 0.0
    %291 = vmatpush1.msra.mxu0 %v274
    %292 = vmatprep.subr.mxu0 0.0
    %293 = vmatpush1.msra.mxu0 0.0
    %294 = vmatprep.subr.mxu0 0.0
    %295 = vmatpush1.msra.mxu0 0.0
    %296 = vmatprep.subr.mxu0 0.0
    %297 = vmatpush1.msra.mxu0 0.0
    %298 = vmatprep.subr.mxu0 0.0
    %299 = vmatpush1.msra.mxu0 0.0
    %300 = vmatprep.subr.mxu0 0.0
    %301 = vmatpush1.msra.mxu0 0.0
    %302 = vmatprep.subr.mxu0 0.0
    %303 = vmatpush1.msra.mxu0 0.0
    %304 = vmatprep.subr.mxu0 0.0
    %305 = vmatpush1.msra.mxu0 0.0
    %306 = vmatprep.subr.mxu0 0.0
    %307 = vmatpush1.msra.mxu0 0.0
    %308 = vmatprep.subr.mxu0 0.0
    %309 = vmatpush1.msra.mxu0 0.0
    %310 = vmatprep.subr.mxu0 0.0
    %311 = vmatpush1.msra.mxu0 0.0
    %312 = vmatprep.subr.mxu0 0.0
    %313 = vmatpush1.msra.mxu0 0.0
    %314 = vmatprep.subr.mxu0 0.0
    %315 = vmatpush1.msra.mxu0 0.0
    %316 = vmatprep.subr.mxu0 0.0
    %317 = vmatpush1.msra.mxu0 0.0
    %318 = vmatprep.subr.mxu0 0.0
    %319 = vmatpush1.msra.mxu0 0.0
    %320 = vmatprep.subr.mxu0 0.0
    %321 = vmatpush1.msra.mxu0 0.0
    %322 = vmatprep.subr.mxu0 0.0
    %323 = vmatpush1.msra.mxu0 0.0
    %324 = vmatprep.subr.mxu0 0.0
    %325 = vmatpush1.msra.mxu0 0.0
    %326 = vmatprep.subr.mxu0 0.0
    %327 = vmatpush1.msra.mxu0 0.0
    %328 = vmatprep.subr.mxu0 0.0
    %329 = vmatpush1.msra.mxu0 0.0
    %330 = vmatprep.subr.mxu0 0.0
    %331 = vmatpush1.msra.mxu0 0.0
    %332 = vmatprep.subr.mxu0 0.0
    %333 = vmatpush1.msra.mxu0 0.0
    %334 = vmatprep.subr.mxu0 0.0
    %335 = vmatpush1.msra.mxu0 0.0
    %336 = vmatprep.subr.mxu0 0.0
    %337 = vmatpush1.msra.mxu0 0.0
    %338 = vmatprep.subr.mxu0 0.0
    %339 = vmatpush1.msra.mxu0 0.0
    %340 = vmatprep.subr.mxu0 0.0
    %341 = vmatpush1.msra.mxu0 0.0
    %342 = vmatprep.subr.mxu0 0.0
    %343 = vmatpush1.msra.mxu0 0.0
    %344 = vmatprep.subr.mxu0 0.0
    %345 = vmatpush1.msra.mxu0 0.0
    %346 = vmatprep.subr.mxu0 0.0
    %347 = vmatpush1.msra.mxu0 0.0
    %348 = vmatprep.subr.mxu0 0.0
    %349 = vmatpush1.msra.mxu0 0.0
    %350 = vmatprep.subr.mxu0 0.0
    %351 = vmatpush1.msra.mxu0 0.0
    %352 = vmatprep.mubr.f32.mxu0 0.0
    %353 = vmatmul.mubr.f32.gmra.mrb[0].mxu0 %v283
    %v354 = vpop.f32.mrb[0].mxu0
    %v355 = vadd.f32 %v280, %v354
    %v356 = vpop.f32.mrb[0].mxu0
    %357 = vmatprep.mubr.f32.mxu0 0.0
    %358 = vmatmul.mubr.f32.gmra.mrb[0].mxu0 %v286
    %v359 = vpop.f32.mrb[0].mxu0
    %v360 = vadd.f32 %v280, %v359
    %v361 = vpop.f32.mrb[0].mxu0
    %362 = vdwg.mxu0
    %v363 = vld [vmem:[%s12] sm:$0xff]
    %vm364 = vcmask 15360
    %v366 = vsel %vm364, %v363, 0
    %vm368 = vcmask 1041408
    %v370 = vsel %vm368, %v141, 0
    %372 = vmatprep.subr.mxu0 0.0
    %373 = vmatpush1.msra.mxu0 %v370
    %374 = vmatprep.subr.mxu0 0.0
    %375 = vmatpush1.msra.mxu0 0.0
    %376 = vmatprep.subr.mxu0 0.0
    %377 = vmatpush1.msra.mxu0 0.0
    %378 = vmatprep.subr.mxu0 0.0
    %379 = vmatpush1.msra.mxu0 0.0
    %380 = vmatprep.subr.mxu0 0.0
    %381 = vmatpush1.msra.mxu0 0.0
    %382 = vmatprep.subr.mxu0 0.0
    %383 = vmatpush1.msra.mxu0 0.0
    %384 = vmatprep.subr.mxu0 0.0
    %385 = vmatpush1.msra.mxu0 0.0
    %386 = vmatprep.subr.mxu0 0.0
    %387 = vmatpush1.msra.mxu0 0.0
    %388 = vmatprep.subr.mxu0 0.0
    %389 = vmatpush1.msra.mxu0 0.0
    %390 = vmatprep.subr.mxu0 0.0
    %391 = vmatpush1.msra.mxu0 0.0
    %392 = vmatprep.subr.mxu0 0.0
    %393 = vmatpush1.msra.mxu0 0.0
    %394 = vmatprep.subr.mxu0 0.0
    %395 = vmatpush1.msra.mxu0 0.0
    %396 = vmatprep.subr.mxu0 0.0
    %397 = vmatpush1.msra.mxu0 0.0
    %398 = vmatprep.subr.mxu0 0.0
    %399 = vmatpush1.msra.mxu0 0.0
    %400 = vmatprep.subr.mxu0 0.0
    %401 = vmatpush1.msra.mxu0 0.0
    %402 = vmatprep.subr.mxu0 0.0
    %403 = vmatpush1.msra.mxu0 0.0
    %404 = vmatprep.subr.mxu0 0.0
    %405 = vmatpush1.msra.mxu0 0.0
    %406 = vmatprep.subr.mxu0 0.0
    %407 = vmatpush1.msra.mxu0 0.0
    %408 = vmatprep.subr.mxu0 0.0
    %409 = vmatpush1.msra.mxu0 0.0
    %410 = vmatprep.subr.mxu0 0.0
    %411 = vmatpush1.msra.mxu0 0.0
    %412 = vmatprep.subr.mxu0 0.0
    %413 = vmatpush1.msra.mxu0 0.0
    %414 = vmatprep.subr.mxu0 0.0
    %415 = vmatpush1.msra.mxu0 0.0
    %416 = vmatprep.subr.mxu0 0.0
    %417 = vmatpush1.msra.mxu0 0.0
    %418 = vmatprep.subr.mxu0 0.0
    %419 = vmatpush1.msra.mxu0 0.0
    %420 = vmatprep.subr.mxu0 0.0
    %421 = vmatpush1.msra.mxu0 0.0
    %422 = vmatprep.subr.mxu0 0.0
    %423 = vmatpush1.msra.mxu0 0.0
    %424 = vmatprep.subr.mxu0 0.0
    %425 = vmatpush1.msra.mxu0 0.0
    %426 = vmatprep.subr.mxu0 0.0
    %427 = vmatpush1.msra.mxu0 0.0
    %428 = vmatprep.subr.mxu0 0.0
    %429 = vmatpush1.msra.mxu0 0.0
    %430 = vmatprep.subr.mxu0 0.0
    %431 = vmatpush1.msra.mxu0 0.0
    %432 = vmatprep.subr.mxu0 0.0
    %433 = vmatpush1.msra.mxu0 0.0
    %434 = vmatprep.subr.mxu0 0.0
    %435 = vmatpush1.msra.mxu0 0.0
    %436 = vmatprep.mubr.f32.mxu0 0.0
    %437 = vmatmul.mubr.f32.gmra.mrb[0].mxu0 %v366
    %v438 = vpop.f32.mrb[0].mxu0
    %v439 = vadd.f32 0.0, %v438
    %v440 = vpop.f32.mrb[0].mxu0
    %441 = vdwg.mxu0
    %v442 = vld [vmem:[%s13] sm:$0xff]
    %v443 = vmul.f32 %v439, %v442
    %v444 = vld [vmem:[%s14] sm:$0xff]
    %vm445 = vcmask 261120
    %v447 = vsel %vm445, %v443, 0
    %449 = vmatprep.subr.mxu0 0.0
    %450 = vmatpush1.msra.mxu0 %v253
    %451 = vmatprep.subr.mxu0 0.0
    %452 = vmatpush1.msra.mxu0 %v258
    %453 = vmatprep.subr.mxu0 0.0
    %454 = vmatpush1.msra.mxu0 %v263
    %455 = vmatprep.subr.mxu0 0.0
    %456 = vmatpush1.msra.mxu0 %v268
    %457 = vmatprep.subr.mxu0 0.0
    %458 = vmatpush1.msra.mxu0 0.0
    %459 = vmatprep.subr.mxu0 0.0
    %460 = vmatpush1.msra.mxu0 0.0
    %461 = vmatprep.subr.mxu0 0.0
    %462 = vmatpush1.msra.mxu0 0.0
    %463 = vmatprep.subr.mxu0 0.0
    %464 = vmatpush1.msra.mxu0 0.0
    %465 = vmatprep.subr.mxu0 0.0
    %466 = vmatpush1.msra.mxu0 0.0
    %467 = vmatprep.subr.mxu0 0.0
    %468 = vmatpush1.msra.mxu0 0.0
    %469 = vmatprep.subr.mxu0 0.0
    %470 = vmatpush1.msra.mxu0 0.0
    %471 = vmatprep.subr.mxu0 0.0
    %472 = vmatpush1.msra.mxu0 0.0
    %473 = vmatprep.subr.mxu0 0.0
    %474 = vmatpush1.msra.mxu0 0.0
    %475 = vmatprep.subr.mxu0 0.0
    %476 = vmatpush1.msra.mxu0 0.0
    %477 = vmatprep.subr.mxu0 0.0
    %478 = vmatpush1.msra.mxu0 0.0
    %479 = vmatprep.subr.mxu0 0.0
    %480 = vmatpush1.msra.mxu0 0.0
    %481 = vmatprep.subr.mxu0 0.0
    %482 = vmatpush1.msra.mxu0 0.0
    %483 = vmatprep.subr.mxu0 0.0
    %484 = vmatpush1.msra.mxu0 0.0
    %485 = vmatprep.subr.mxu0 0.0
    %486 = vmatpush1.msra.mxu0 0.0
    %487 = vmatprep.subr.mxu0 0.0
    %488 = vmatpush1.msra.mxu0 0.0
    %489 = vmatprep.subr.mxu0 0.0
    %490 = vmatpush1.msra.mxu0 0.0
    %491 = vmatprep.subr.mxu0 0.0
    %492 = vmatpush1.msra.mxu0 0.0
    %493 = vmatprep.subr.mxu0 0.0
    %494 = vmatpush1.msra.mxu0 0.0
    %495 = vmatprep.subr.mxu0 0.0
    %496 = vmatpush1.msra.mxu0 0.0
    %497 = vmatprep.subr.mxu0 0.0
    %498 = vmatpush1.msra.mxu0 0.0
    %499 = vmatprep.subr.mxu0 0.0
    %500 = vmatpush1.msra.mxu0 0.0
    %501 = vmatprep.subr.mxu0 0.0
    %502 = vmatpush1.msra.mxu0 0.0
    %503 = vmatprep.subr.mxu0 0.0
    %504 = vmatpush1.msra.mxu0 0.0
    %505 = vmatprep.subr.mxu0 0.0
    %506 = vmatpush1.msra.mxu0 0.0
    %507 = vmatprep.subr.mxu0 0.0
    %508 = vmatpush1.msra.mxu0 0.0
    %509 = vmatprep.subr.mxu0 0.0
    %510 = vmatpush1.msra.mxu0 0.0
    %511 = vmatprep.subr.mxu0 0.0
    %512 = vmatpush1.msra.mxu0 0.0
    %513 = vmatprep.mubr.f32.mxu0 0.0
    %514 = vmatmul.mubr.f32.gmra.mrb[0].mxu0 %v447
    %v515 = vpop.f32.mrb[0].mxu0
    %v516 = vadd.f32 %v444, %v515
    %v517 = vpop.f32.mrb[0].mxu0
    %518 = vdwg.mxu0
    %v519 = vld [vmem:[%s3] sm:$0x1]
    %v521 = vlaneseq
    %v522 = vshrl.u32 %v521, 7
    %v523 = vsub.s32 0, %v522
    %v524 = vrot.slane %v519, %v523
    %v526 = vadd.f32 %v516, %v524
    %v527 = vsel %vm70, %v526, -inf
    %528 = vmax.xlane.f32.xlu0 %v527
    %v529 = vpop.xlane.xlu0 %528
    %v530 = vsub.f32 %v526, %v529
    %v531 = vmul.f32 %v530, 1.442695
    %v532 = vpow.pop %v531
    %v533 = vsel %vm70, %v532, 0.0
    %534 = vadd.xlane.f32.xlu0 %v533
    %v535 = vpop.xlane.xlu0 %534
    %v536 = vrcp.pop %v535
    %v537 = vmul.f32 %v532, %v536
    %v538 = vld [vmem:[%s15] sm:$0xff]
    %v539 = vld [vmem:[%s15 + $0x8] sm:$0xff]
    %v541 = vsel %vm70, %v537, 0
    %543 = vmatprep.subr.mxu0 0.0
    %544 = vmatpush1.msra.mxu0 %v538
    %545 = vmatprep.subr.mxu0 0.0
    %546 = vmatpush1.msra.mxu0 %v539
    %547 = vmatprep.subr.mxu0 0.0
    %548 = vmatpush1.msra.mxu0 0.0
    %549 = vmatprep.subr.mxu0 0.0
    %550 = vmatpush1.msra.mxu0 0.0
    %551 = vmatprep.subr.mxu0 0.0
    %552 = vmatpush1.msra.mxu0 0.0
    %553 = vmatprep.subr.mxu0 0.0
    %554 = vmatpush1.msra.mxu0 0.0
    %555 = vmatprep.subr.mxu0 0.0
    %556 = vmatpush1.msra.mxu0 0.0
    %557 = vmatprep.subr.mxu0 0.0
    %558 = vmatpush1.msra.mxu0 0.0
    %559 = vmatprep.subr.mxu0 0.0
    %560 = vmatpush1.msra.mxu0 0.0
    %561 = vmatprep.subr.mxu0 0.0
    %562 = vmatpush1.msra.mxu0 0.0
    %563 = vmatprep.subr.mxu0 0.0
    %564 = vmatpush1.msra.mxu0 0.0
    %565 = vmatprep.subr.mxu0 0.0
    %566 = vmatpush1.msra.mxu0 0.0
    %567 = vmatprep.subr.mxu0 0.0
    %568 = vmatpush1.msra.mxu0 0.0
    %569 = vmatprep.subr.mxu0 0.0
    %570 = vmatpush1.msra.mxu0 0.0
    %571 = vmatprep.subr.mxu0 0.0
    %572 = vmatpush1.msra.mxu0 0.0
    %573 = vmatprep.subr.mxu0 0.0
    %574 = vmatpush1.msra.mxu0 0.0
    %575 = vmatprep.subr.mxu0 0.0
    %576 = vmatpush1.msra.mxu0 0.0
    %577 = vmatprep.subr.mxu0 0.0
    %578 = vmatpush1.msra.mxu0 0.0
    %579 = vmatprep.subr.mxu0 0.0
    %580 = vmatpush1.msra.mxu0 0.0
    %581 = vmatprep.subr.mxu0 0.0
    %582 = vmatpush1.msra.mxu0 0.0
    %583 = vmatprep.subr.mxu0 0.0
    %584 = vmatpush1.msra.mxu0 0.0
    %585 = vmatprep.subr.mxu0 0.0
    %586 = vmatpush1.msra.mxu0 0.0
    %587 = vmatprep.subr.mxu0 0.0
    %588 = vmatpush1.msra.mxu0 0.0
    %589 = vmatprep.subr.mxu0 0.0
    %590 = vmatpush1.msra.mxu0 0.0
    %591 = vmatprep.subr.mxu0 0.0
    %592 = vmatpush1.msra.mxu0 0.0
    %593 = vmatprep.subr.mxu0 0.0
    %594 = vmatpush1.msra.mxu0 0.0
    %595 = vmatprep.subr.mxu0 0.0
    %596 = vmatpush1.msra.mxu0 0.0
    %597 = vmatprep.subr.mxu0 0.0
    %598 = vmatpush1.msra.mxu0 0.0
    %599 = vmatprep.subr.mxu0 0.0
    %600 = vmatpush1.msra.mxu0 0.0
    %601 = vmatprep.subr.mxu0 0.0
    %602 = vmatpush1.msra.mxu0 0.0
    %603 = vmatprep.subr.mxu0 0.0
    %604 = vmatpush1.msra.mxu0 0.0
    %605 = vmatprep.subr.mxu0 0.0
    %606 = vmatpush1.msra.mxu0 0.0
    %607 = vmatprep.mubr.f32.mxu0 0.0
    %608 = vmatmul.mubr.f32.gmra.mrb[0].mxu0 %v541
    %v609 = vpop.f32.mrb[0].mxu0
    %v610 = vadd.f32 0.0, %v609
    %v611 = vpop.f32.mrb[0].mxu0
    %612 = vdwg.mxu0
    %vm613 = vcmask 64512
    %614 = vst.msk [vmem:[#allocation2] sm:$0xff] %vm613, %v610
    %615 = vmatprep.subr.mxu0 0.0
    %616 = vmatpush1.msra.mxu0 %v355
    %617 = vmatprep.subr.mxu0 0.0
    %618 = vmatpush1.msra.mxu0 %v360
    %619 = vmatprep.subr.mxu0 0.0
    %620 = vmatpush1.msra.mxu0 0.0
    %621 = vmatprep.subr.mxu0 0.0
    %622 = vmatpush1.msra.mxu0 0.0
    %623 = vmatprep.subr.mxu0 0.0
    %624 = vmatpush1.msra.mxu0 0.0
    %625 = vmatprep.subr.mxu0 0.0
    %626 = vmatpush1.msra.mxu0 0.0
    %627 = vmatprep.subr.mxu0 0.0
    %628 = vmatpush1.msra.mxu0 0.0
    %629 = vmatprep.subr.mxu0 0.0
    %630 = vmatpush1.msra.mxu0 0.0
    %631 = vmatprep.subr.mxu0 0.0
    %632 = vmatpush1.msra.mxu0 0.0
    %633 = vmatprep.subr.mxu0 0.0
    %634 = vmatpush1.msra.mxu0 0.0
    %635 = vmatprep.subr.mxu0 0.0
    %636 = vmatpush1.msra.mxu0 0.0
    %637 = vmatprep.subr.mxu0 0.0
    %638 = vmatpush1.msra.mxu0 0.0
    %639 = vmatprep.subr.mxu0 0.0
    %640 = vmatpush1.msra.mxu0 0.0
    %641 = vmatprep.subr.mxu0 0.0
    %642 = vmatpush1.msra.mxu0 0.0
    %643 = vmatprep.subr.mxu0 0.0
    %644 = vmatpush1.msra.mxu0 0.0
    %645 = vmatprep.subr.mxu0 0.0
    %646 = vmatpush1.msra.mxu0 0.0
    %647 = vmatprep.subr.mxu0 0.0
    %648 = vmatpush1.msra.mxu0 0.0
    %649 = vmatprep.subr.mxu0 0.0
    %650 = vmatpush1.msra.mxu0 0.0
    %651 = vmatprep.subr.mxu0 0.0
    %652 = vmatpush1.msra.mxu0 0.0
    %653 = vmatprep.subr.mxu0 0.0
    %654 = vmatpush1.msra.mxu0 0.0
    %655 = vmatprep.subr.mxu0 0.0
    %656 = vmatpush1.msra.mxu0 0.0
    %657 = vmatprep.subr.mxu0 0.0
    %658 = vmatpush1.msra.mxu0 0.0
    %659 = vmatprep.subr.mxu0 0.0
    %660 = vmatpush1.msra.mxu0 0.0
    %661 = vmatprep.subr.mxu0 0.0
    %662 = vmatpush1.msra.mxu0 0.0
    %663 = vmatprep.subr.mxu0 0.0
    %664 = vmatpush1.msra.mxu0 0.0
    %665 = vmatprep.subr.mxu0 0.0
    %666 = vmatpush1.msra.mxu0 0.0
    %667 = vmatprep.subr.mxu0 0.0
    %668 = vmatpush1.msra.mxu0 0.0
    %669 = vmatprep.subr.mxu0 0.0
    %670 = vmatpush1.msra.mxu0 0.0
    %671 = vmatprep.subr.mxu0 0.0
    %672 = vmatpush1.msra.mxu0 0.0
    %673 = vmatprep.subr.mxu0 0.0
    %674 = vmatpush1.msra.mxu0 0.0
    %675 = vmatprep.subr.mxu0 0.0
    %676 = vmatpush1.msra.mxu0 0.0
    %677 = vmatprep.subr.mxu0 0.0
    %678 = vmatpush1.msra.mxu0 0.0
    %679 = vmatprep.mubr.f32.mxu0 0.0
    %680 = vmatmul.mubr.f32.gmra.mrb[0].mxu0 %v541
    %v681 = vpop.f32.mrb[0].mxu0
    %v682 = vadd.f32 0.0, %v681
    %v683 = vpop.f32.mrb[0].mxu0
    %684 = vdwg.mxu0
    %v685 = vld [vmem:[%s16] sm:$0x3]
    %v686 = vld [vmem:[%s13] sm:$0xff]
    %v687 = vmul.f32 %v686, %v682
    %v689 = vsel %vm613, %v685, 0
    %691 = vmatprep.subr.mxu0 0.0
    %692 = vmatpush1.msra.mxu0 %v687
    %693 = vmatprep.subr.mxu0 0.0
    %694 = vmatpush1.msra.mxu0 0.0
    %695 = vmatprep.subr.mxu0 0.0
    %696 = vmatpush1.msra.mxu0 0.0
    %697 = vmatprep.subr.mxu0 0.0
    %698 = vmatpush1.msra.mxu0 0.0
    %699 = vmatprep.subr.mxu0 0.0
    %700 = vmatpush1.msra.mxu0 0.0
    %701 = vmatprep.subr.mxu0 0.0
    %702 = vmatpush1.msra.mxu0 0.0
    %703 = vmatprep.subr.mxu0 0.0
    %704 = vmatpush1.msra.mxu0 0.0
    %705 = vmatprep.subr.mxu0 0.0
    %706 = vmatpush1.msra.mxu0 0.0
    %707 = vmatprep.subr.mxu0 0.0
    %708 = vmatpush1.msra.mxu0 0.0
    %709 = vmatprep.subr.mxu0 0.0
    %710 = vmatpush1.msra.mxu0 0.0
    %711 = vmatprep.subr.mxu0 0.0
    %712 = vmatpush1.msra.mxu0 0.0
    %713 = vmatprep.subr.mxu0 0.0
    %714 = vmatpush1.msra.mxu0 0.0
    %715 = vmatprep.subr.mxu0 0.0
    %716 = vmatpush1.msra.mxu0 0.0
    %717 = vmatprep.subr.mxu0 0.0
    %718 = vmatpush1.msra.mxu0 0.0
    %719 = vmatprep.subr.mxu0 0.0
    %720 = vmatpush1.msra.mxu0 0.0
    %721 = vmatprep.subr.mxu0 0.0
    %722 = vmatpush1.msra.mxu0 0.0
    %723 = vmatprep.subr.mxu0 0.0
    %724 = vmatpush1.msra.mxu0 0.0
    %725 = vmatprep.subr.mxu0 0.0
    %726 = vmatpush1.msra.mxu0 0.0
    %727 = vmatprep.subr.mxu0 0.0
    %728 = vmatpush1.msra.mxu0 0.0
    %729 = vmatprep.subr.mxu0 0.0
    %730 = vmatpush1.msra.mxu0 0.0
    %731 = vmatprep.subr.mxu0 0.0
    %732 = vmatpush1.msra.mxu0 0.0
    %733 = vmatprep.subr.mxu0 0.0
    %734 = vmatpush1.msra.mxu0 0.0
    %735 = vmatprep.subr.mxu0 0.0
    %736 = vmatpush1.msra.mxu0 0.0
    %737 = vmatprep.subr.mxu0 0.0
    %738 = vmatpush1.msra.mxu0 0.0
    %739 = vmatprep.subr.mxu0 0.0
    %740 = vmatpush1.msra.mxu0 0.0
    %741 = vmatprep.subr.mxu0 0.0
    %742 = vmatpush1.msra.mxu0 0.0
    %743 = vmatprep.subr.mxu0 0.0
    %744 = vmatpush1.msra.mxu0 0.0
    %745 = vmatprep.subr.mxu0 0.0
    %746 = vmatpush1.msra.mxu0 0.0
    %747 = vmatprep.subr.mxu0 0.0
    %748 = vmatpush1.msra.mxu0 0.0
    %749 = vmatprep.subr.mxu0 0.0
    %750 = vmatpush1.msra.mxu0 0.0
    %751 = vmatprep.subr.mxu0 0.0
    %752 = vmatpush1.msra.mxu0 0.0
    %753 = vmatprep.subr.mxu0 0.0
    %754 = vmatpush1.msra.mxu0 0.0
    %755 = vmatprep.mubr.f32.mxu0 0.0
    %756 = vmatmul.mubr.f32.gmra.mrb[0].mxu0 %v689
    %v757 = vpop.f32.mrb[0].mxu0
    %v758 = vadd.f32 0.0, %v757
    %v759 = vpop.f32.mrb[0].mxu0
    %760 = vdwg.mxu0
    %v761 = vld [vmem:[%s10] sm:$0xff]
    %v762 = vld [vmem:[%s10 + $0x8] sm:$0xff]
    %v763 = vld [vmem:[%s10 + $0x10] sm:$0xff]
    %v764 = vld [vmem:[%s10 + $0x18] sm:$0xff]
    %v765 = vld [vmem:[%s11] sm:$0x1]
    %v767 = vlaneseq
    %v768 = vshrl.u32 %v767, 7
    %v769 = vsub.s32 0, %v768
    %v770 = vrot.slane %v765, %v769
    %v773 = vsel %vm445, %v758, 0
    %775 = vmatprep.subr.mxu0 0.0
    %776 = vmatpush1.msra.mxu0 %v761
    %777 = vmatprep.subr.mxu0 0.0
    %778 = vmatpush1.msra.mxu0 %v762
    %779 = vmatprep.subr.mxu0 0.0
    %780 = vmatpush1.msra.mxu0 %v763
    %781 = vmatprep.subr.mxu0 0.0
    %782 = vmatpush1.msra.mxu0 %v764
    %783 = vmatprep.subr.mxu0 0.0
    %784 = vmatpush1.msra.mxu0 0.0
    %785 = vmatprep.subr.mxu0 0.0
    %786 = vmatpush1.msra.mxu0 0.0
    %787 = vmatprep.subr.mxu0 0.0
    %788 = vmatpush1.msra.mxu0 0.0
    %789 = vmatprep.subr.mxu0 0.0
    %790 = vmatpush1.msra.mxu0 0.0
    %791 = vmatprep.subr.mxu0 0.0
    %792 = vmatpush1.msra.mxu0 0.0
    %793 = vmatprep.subr.mxu0 0.0
    %794 = vmatpush1.msra.mxu0 0.0
    %795 = vmatprep.subr.mxu0 0.0
    %796 = vmatpush1.msra.mxu0 0.0
    %797 = vmatprep.subr.mxu0 0.0
    %798 = vmatpush1.msra.mxu0 0.0
    %799 = vmatprep.subr.mxu0 0.0
    %800 = vmatpush1.msra.mxu0 0.0
    %801 = vmatprep.subr.mxu0 0.0
    %802 = vmatpush1.msra.mxu0 0.0
    %803 = vmatprep.subr.mxu0 0.0
    %804 = vmatpush1.msra.mxu0 0.0
    %805 = vmatprep.subr.mxu0 0.0
    %806 = vmatpush1.msra.mxu0 0.0
    %807 = vmatprep.subr.mxu0 0.0
    %808 = vmatpush1.msra.mxu0 0.0
    %809 = vmatprep.subr.mxu0 0.0
    %810 = vmatpush1.msra.mxu0 0.0
    %811 = vmatprep.subr.mxu0 0.0
    %812 = vmatpush1.msra.mxu0 0.0
    %813 = vmatprep.subr.mxu0 0.0
    %814 = vmatpush1.msra.mxu0 0.0
    %815 = vmatprep.subr.mxu0 0.0
    %816 = vmatpush1.msra.mxu0 0.0
    %817 = vmatprep.subr.mxu0 0.0
    %818 = vmatpush1.msra.mxu0 0.0
    %819 = vmatprep.subr.mxu0 0.0
    %820 = vmatpush1.msra.mxu0 0.0
    %821 = vmatprep.subr.mxu0 0.0
    %822 = vmatpush1.msra.mxu0 0.0
    %823 = vmatprep.subr.mxu0 0.0
    %824 = vmatpush1.msra.mxu0 0.0
    %825 = vmatprep.subr.mxu0 0.0
    %826 = vmatpush1.msra.mxu0 0.0
    %827 = vmatprep.subr.mxu0 0.0
    %828 = vmatpush1.msra.mxu0 0.0
    %829 = vmatprep.subr.mxu0 0.0
    %830 = vmatpush1.msra.mxu0 0.0
    %831 = vmatprep.subr.mxu0 0.0
    %832 = vmatpush1.msra.mxu0 0.0
    %833 = vmatprep.subr.mxu0 0.0
    %834 = vmatpush1.msra.mxu0 0.0
    %835 = vmatprep.subr.mxu0 0.0
    %836 = vmatpush1.msra.mxu0 0.0
    %837 = vmatprep.subr.mxu0 0.0
    %838 = vmatpush1.msra.mxu0 0.0
    %839 = vmatprep.mubr.f32.mxu0 0.0
    %840 = vmatmul.mubr.f32.gmra.mrb[0].mxu0 %v773
    %v841 = vpop.f32.mrb[0].mxu0
    %v842 = vadd.f32 %v770, %v841
    %v843 = vpop.f32.mrb[0].mxu0
    %844 = vdwg.mxu0
    %vm845 = vcmask 123904
    %846 = vst.msk [vmem:[#allocation4] sm:$0x3] %vm845, %v842
    // Predicated region
    $region70: #{glimpse_forward.1} parent=1 // pred_check
      _
    $region71: #{glimpse_forward.1} parent=1 // pred_check_branch
      %848 = sbr.rel (0) target = $region73
    $region72: #{glimpse_forward.1} parent=1 // pred_region
      %s850 = ssub.s32 128, 128
      %851 = vsyncadd [#allocation3], %s850
      %s853 = sshll.u32 [#allocation2], 4
      %s854 = int_to_ptr.vmem [resolvable:$true] %s853
      %856 = dma.vmem_to_hbm [thread:$0]  %s854, 128, %s17, [#allocation3]
    $region73: #{glimpse_forward.1} parent=1 // pred_fallthru
      _
    // Predicated region
    $region74: #{glimpse_forward.1} parent=1 // pred_check
      _
    $region75: #{glimpse_forward.1} parent=1 // pred_check_branch
      %858 = sbr.rel (0) target = $region77
    $region76: #{glimpse_forward.1} parent=1 // pred_region
      %s860 = ssub.s32 32, 32
      %861 = vsyncadd [#allocation5], %s860
      %s863 = sshll.u32 [#allocation4], 4
      %s864 = int_to_ptr.vmem [resolvable:$true] %s863
      %866 = dma.vmem_to_hbm [thread:$0]  %s864, 32, %s18, [#allocation5]
    $region77: #{glimpse_forward.1} parent=1 // pred_fallthru
      _
    // Predicated region
    $region78: #{glimpse_forward.1} parent=1 // pred_check
      _
    $region79: #{glimpse_forward.1} parent=1 // pred_check_branch
      %868 = sbr.rel (0) target = $region81
    $region80: #{glimpse_forward.1} parent=1 // pred_region
      %869 = dma.done [#allocation3], 128
    $region81: #{glimpse_forward.1} parent=1 // pred_fallthru
      _
    // Predicated region
    $region82: #{glimpse_forward.1} parent=1 // pred_check
      _
    $region83: #{glimpse_forward.1} parent=1 // pred_check_branch
      %871 = sbr.rel (0) target = $region85
    $region84: #{glimpse_forward.1} parent=1 // pred_region
      %872 = dma.done [#allocation5], 32
    $region85: #{glimpse_forward.1} parent=1 // pred_fallthru
      _
    %873 = vsyncpa [#allocation3], 1
    %874 = vsyncpa [#allocation5], 1

</llo_original>
